<compile_context>
chip_gen: v6e
topology: v6e:2x2x1
jax: 0.10.0
libtpu: 0.0.40
codegen_flags: <defaults>
</compile_context>

<pallas_src>
import functools
import math

import jax
import jax.numpy as jnp
from jax.experimental import pallas as pl
from jax.experimental.pallas import tpu as pltpu


def make_positional_encoding(d_model: int, max_len: int = 5000, dtype=jnp.float32):
    """Builds the sinusoidal buffer once. Returns (max_len, d_model), pre-cast."""
    position = jnp.arange(max_len, dtype=jnp.float32)[:, None]                # (max_len, 1)
    div_term = jnp.exp(
        jnp.arange(0, d_model, 2, dtype=jnp.float32) * (-math.log(10000.0) / d_model)
    )                                                                         # (d_model//2,)
    angles = position * div_term                                              # (max_len, d_model//2)
    pe = jnp.zeros((max_len, d_model), dtype=jnp.float32)
    pe = pe.at[:, 0::2].set(jnp.sin(angles))
    pe = pe.at[:, 1::2].set(jnp.cos(angles))
    return pe.astype(dtype)  # cast once at init, not per forward call


# ----------------------------- kernels ---------------------------------------

def _pe_add_full_kernel(x_ref, pe_ref, o_ref):
    # x_ref/o_ref: (B, S, D) full arrays in VMEM; pe_ref: (S, D).
    o_ref[...] = x_ref[...] + pe_ref[...]


def _pe_add_seq_tiled_kernel(x_ref, pe_ref, o_ref):
    # x_ref/o_ref: (1, TS, D) block of one batch row; pe_ref: (TS, D) table rows.
    o_ref[...] = x_ref[...] + pe_ref[...]


def _pe_add_lane_dense_kernel(x_ref, pe_ref, o_ref):
    # x_ref/o_ref: (B, TILE) flattened block; pe_ref: (1, TILE) flattened table block.
    o_ref[...] = x_ref[...] + pe_ref[...]


# --------------------------- tile selection -----------------------------------

_BLOCK_BUDGET_BYTES = 4 * 1024 * 1024   # per (ts, D) / per (B, tile) x-block
_TINY_BYTES = 1 * 1024 * 1024           # below this: single-block no-grid path
_VMEM_LIMIT_CAP = 48 << 20              # stay under v7x's 64 MiB physical VMEM
_VMEM_LIMIT_FLOOR = 32 << 20            # >= v5e's 16 MiB scoped default


def _sublane_pack(itemsize: int) -> int:
    # Packed sublane height: 8 rows for f32, 16 for bf16, 32 for int8/fp8.
    return max(8, 32 // max(1, itemsize))


def _choose_seq_tile(S: int, D: int, max_len: int, itemsize: int, budget: int) -> int:
    pack = _sublane_pack(itemsize)
    ts = budget // max(1, D * itemsize)
    ts = max(pack, min(ts, S))
    ts = ((ts + pack - 1) // pack) * pack          # round UP to packed-sublane multiple
    ts = min(ts, max(pack, (max_len // pack) * pack))  # never index past the table
    return ts


def _choose_flat_tile(B: int, flat: int, itemsize: int, budget: int) -> int:
    budget_elems = max(512, budget // max(1, B * itemsize))
    tile = min(flat, budget_elems)
    if tile < flat:
        tile = (tile // 512) * 512                 # >=512 lanes per DMA segment / vst run
    return tile


def _vmem_limit(block_bytes_total: int) -> int:
    # block_bytes_total = one pipeline step's worth of blocks; double-buffered + margin.
    needed = 2 * block_bytes_total + (4 << 20)
    return int(min(_VMEM_LIMIT_CAP, max(needed, _VMEM_LIMIT_FLOOR)))


# ------------------------------ forward ---------------------------------------

def positional_encoding_forward(
    x,
    pe,
    *,
    block_budget_bytes: int = _BLOCK_BUDGET_BYTES,
    tiny_bytes: int = _TINY_BYTES,
):
    """x: (B, S, D); pe: (max_len, D), pre-cast to x.dtype. Returns x + pe[None, :S, :]."""
    B, S, D = x.shape
    max_len = pe.shape[0]
    if S > max_len:
        raise ValueError(f"sequence length {S} exceeds positional table max_len {max_len}")
    if pe.dtype != x.dtype:
        # Silent per-call astype would materialize a full (max_len, D) cast in HBM.
        raise TypeError(f"pe dtype {pe.dtype} != x dtype {x.dtype}; cast once at init")

    itemsize = jnp.dtype(x.dtype).itemsize
    total_bytes = B * S * D * itemsize
    cost = pl.CostEstimate(
        flops=B * S * D,
        transcendentals=0,
        bytes_accessed=(2 * B * S * D + S * D) * itemsize,
    )

    # ---- tiny fast path: one full-array block, no grid / no pipeline overhead ----
    if total_bytes < tiny_bytes:
        pe_rows = pe[:S]  # (S, D); tiny slice, negligible vs. kernel traffic here
        return pl.pallas_call(
            _pe_add_full_kernel,
            out_shape=jax.ShapeDtypeStruct((B, S, D), x.dtype),
            in_specs=[
                pl.BlockSpec(memory_space=pltpu.MemorySpace.VMEM),
                pl.BlockSpec(memory_space=pltpu.MemorySpace.VMEM),
            ],
            out_specs=pl.BlockSpec(memory_space=pltpu.MemorySpace.VMEM),
            cost_estimate=cost,
        )(x, pe_rows)

    # ---- lane-dense flat path when D is not a multiple of 128 ----
    if D % 128 != 0:
        flat = S * D
        tile = _choose_flat_tile(B, flat, itemsize, block_budget_bytes)
        if tile >= 512 and tile % 512 == 0:
            # Flattened offsets s*D + d line up between x and the full pe table, so
            # the same block index selects matching elements.  The ragged last block
            # adds real pe values (rows > S) only to x lanes that are masked on store.
            xf = x.reshape(B, flat)
            pef = pe.reshape(1, max_len * D)
            step_bytes = (2 * B + 1) * tile * itemsize  # x + out + pe blocks
            out = pl.pallas_call(
                _pe_add_lane_dense_kernel,
                out_shape=jax.ShapeDtypeStruct((B, flat), x.dtype),
                grid=(pl.cdiv(flat, tile),),
                in_specs=[
                    pl.BlockSpec((B, tile), lambda t: (0, t)),
                    pl.BlockSpec((1, tile), lambda t: (0, t)),
                ],
                out_specs=pl.BlockSpec((B, tile), lambda t: (0, t)),
                compiler_params=pltpu.CompilerParams(
                    dimension_semantics=("parallel",),
                    vmem_limit_bytes=_vmem_limit(step_bytes),
                ),
                cost_estimate=cost,
            )(xf, pef)
            return out.reshape(B, S, D)

    # ---- general seq-tiled path ----
    # Grid = (seq_tiles, B): seq OUTER, batch INNER -> the pe block index is
    # constant across consecutive inner steps, so its DMA is not re-issued per
    # batch row.  pe rows come straight from the full pre-cast table via the
    # index_map (no wrapper-side slice/cast).
    ts = _choose_seq_tile(S, D, max_len, itemsize, block_budget_bytes)
    step_bytes = 3 * ts * D * itemsize  # x + out + pe blocks per pipeline step
    return pl.pallas_call(
        _pe_add_seq_tiled_kernel,
        out_shape=jax.ShapeDtypeStruct((B, S, D), x.dtype),
        grid=(pl.cdiv(S, ts), B),
        in_specs=[
            pl.BlockSpec((1, ts, D), lambda s, b: (b, s, 0)),
            pl.BlockSpec((ts, D), lambda s, b: (s, 0)),
        ],
        out_specs=pl.BlockSpec((1, ts, D), lambda s, b: (b, s, 0)),
        compiler_params=pltpu.CompilerParams(
            dimension_semantics=("parallel", "parallel"),
            vmem_limit_bytes=_vmem_limit(step_bytes),
        ),
        cost_estimate=cost,
    )(x, pe)


if __name__ == "__main__":
    MAX_LEN = 5000

    # 1) shipped small shape (B=2, S=8, d_model=32) -> tiny no-grid path
    B, S, D = 2, 8, 32
    x = jax.random.normal(jax.random.PRNGKey(0), (B, S, D), dtype=jnp.float32)
    pe = make_positional_encoding(D, MAX_LEN, dtype=x.dtype)
    out = jax.block_until_ready(jax.jit(positional_encoding_forward)(x, pe))
    ref = x + pe[None, :S, :]
    assert out.shape == (B, S, D)
    assert jnp.allclose(out, ref, atol=1e-6, rtol=1e-6)

    # 2) general seq-tiled path (D % 128 == 0), small budget to force a 2x2 grid
    B2, S2, D2 = 2, 256, 128
    x2 = jax.random.normal(jax.random.PRNGKey(1), (B2, S2, D2), dtype=jnp.float32)
    pe2 = make_positional_encoding(D2, MAX_LEN, dtype=x2.dtype)
    fwd2 = jax.jit(functools.partial(
        positional_encoding_forward, tiny_bytes=0, block_budget_bytes=64 * 1024))
    out2 = jax.block_until_ready(fwd2(x2, pe2))
    ref2 = x2 + pe2[None, :S2, :]
    assert jnp.allclose(out2, ref2, atol=1e-6, rtol=1e-6)

    # 3) lane-dense flat path (D=96 not a multiple of 128), forced multi-tile grid
    B3, S3, D3 = 2, 64, 96
    x3 = jax.random.normal(jax.random.PRNGKey(2), (B3, S3, D3), dtype=jnp.float32)
    pe3 = make_positional_encoding(D3, MAX_LEN, dtype=x3.dtype)
    fwd3 = jax.jit(functools.partial(
        positional_encoding_forward, tiny_bytes=0, block_budget_bytes=16 * 1024))
    out3 = jax.block_until_ready(fwd3(x3, pe3))
    ref3 = x3 + pe3[None, :S3, :]
    assert jnp.allclose(out3, ref3, atol=1e-6, rtol=1e-6)

    # 4) bf16 general path (exercises the 16-row packed-sublane tile alignment)
    B4, S4, D4 = 2, 128, 128
    x4 = jax.random.normal(
        jax.random.PRNGKey(3), (B4, S4, D4), dtype=jnp.float32).astype(jnp.bfloat16)
    pe4 = make_positional_encoding(D4, MAX_LEN, dtype=jnp.bfloat16)
    fwd4 = jax.jit(functools.partial(
        positional_encoding_forward, tiny_bytes=0, block_budget_bytes=32 * 1024))
    out4 = jax.block_until_ready(fwd4(x4, pe4))
    ref4 = x4 + pe4[None, :S4, :]
    assert jnp.allclose(out4.astype(jnp.float32), ref4.astype(jnp.float32),
                        atol=1e-2, rtol=1e-2)

    print("KERNEL_OK")
</pallas_src>

<mosaic_0001>
module attributes {stable_mosaic.version = 11 : i64} {
  func.func @_pe_add_full_kernel(%arg0: memref<2x8x32xf32, #tpu.memory_space<vmem>>, %arg1: memref<8x32xf32, #tpu.memory_space<vmem>>, %arg2: memref<2x8x32xf32, #tpu.memory_space<vmem>>) attributes {dimension_semantics = [], scalar_prefetch = 0 : i64, scratch_operands = 0 : i64, tpu.core_type = #tpu.core_type<tc>} {
    %c0 = arith.constant 0 : index
    %c0_0 = arith.constant 0 : index
    %c0_1 = arith.constant 0 : index
    %0 = vector.load %arg0[%c0, %c0_0, %c0_1] : memref<2x8x32xf32, #tpu.memory_space<vmem>>, vector<2x8x32xf32>
    %c0_2 = arith.constant 0 : index
    %c0_3 = arith.constant 0 : index
    %1 = vector.load %arg1[%c0_2, %c0_3] : memref<8x32xf32, #tpu.memory_space<vmem>>, vector<8x32xf32>
    %2 = vector.shape_cast %1 : vector<8x32xf32> to vector<1x8x32xf32>
    %3 = vector.broadcast %2 : vector<1x8x32xf32> to vector<2x8x32xf32>
    %4 = arith.addf %0, %3 : vector<2x8x32xf32>
    %c0_4 = arith.constant 0 : index
    %c0_5 = arith.constant 0 : index
    %c0_6 = arith.constant 0 : index
    %5 = vector.load %arg2[%c0_4, %c0_5, %c0_6] : memref<2x8x32xf32, #tpu.memory_space<vmem>>, vector<2x8x32xf32>
    tpu.vector_store %arg2[%c0_4, %c0_5, %c0_6], %4 {strides = array<i32>} : memref<2x8x32xf32, #tpu.memory_space<vmem>>, vector<2x8x32xf32>,
    return
  }
}

</mosaic_0001>

<llo_original>
// kernel: positional_encoding_forward.1
$region0: #{positional_encoding_forward.1}
  #allocation0 [shape = 'u32[]', space=smem, size = 0x4, offset = 0x4, fixed_abs, tag = 'smem constant byte address 0x4 - core index']
  #allocation1 [shape = 'u32[144,128]{1,0:T(1,128)}', space=vmem, size = 0x12000, scoped, tag = 'internal scratch']
  %s0 = inlined_call_operand.vmem [shape: f32[2,8,32], index: 0, kind: input, shape index: {}]
  %s1 = inlined_call_operand.vmem [shape: f32[8,32], index: 1, kind: input, shape index: {}]
  %s2 = inlined_call_operand.hbm [shape: f32[2,8,32], index: 2, kind: output, shape index: {}]
  %s3 = sld [smem:[#allocation0]]
  $region18: #{positional_encoding_forward.1} parent=0
    _
  %s5 = ssub.s32 1, %s3
  %s6 = scalar_select 0, %s5, %s3
  $region1: #{positional_encoding_forward.1} parent=0
    #allocation2 [shape = 'u8[8192]{0}', space=vmem, size = 0x2000, scoped, tag = 'output window, operand 0, single buffered']
    #allocation3 [shape = 's32[1]{0}', space=sflag, size = 0x4, scoped, tag = 'scoped memory for positional_encoding_forward.1']
    %7 = vsyncpa [#allocation3], 0
    // Predicated region
    $region2: #{positional_encoding_forward.1} parent=1 // pred_check
      _
    $region3: #{positional_encoding_forward.1} parent=1 // pred_check_branch
      %9 = sbr.rel (0) target = $region5
    $region4: #{positional_encoding_forward.1} parent=1 // pred_region
      _
    $region5: #{positional_encoding_forward.1} parent=1 // pred_fallthru
      _
    // Predicated region
    $region6: #{positional_encoding_forward.1} parent=1 // pred_check
      _
    $region7: #{positional_encoding_forward.1} parent=1 // pred_check_branch
      %11 = sbr.rel (0) target = $region9
    $region8: #{positional_encoding_forward.1} parent=1 // pred_region
      _
    $region9: #{positional_encoding_forward.1} parent=1 // pred_fallthru
      _
    %v12 = vld [vmem:[%s0] sm:$0xff]
    %v13 = vld [vmem:[%s0 + $0x8] sm:$0xff]
    %v14 = vld [vmem:[%s1] sm:$0xff]
    %v15 = vadd.f32 %v12, %v14
    %v16 = vadd.f32 %v13, %v14
    %vm17 = vcmask 261120
    %18 = vst.msk [vmem:[#allocation2] sm:$0xff] %vm17, %v15
    %19 = vst.msk [vmem:[#allocation2 + $0x8] sm:$0xff] %vm17, %v16
    // Predicated region
    $region10: #{positional_encoding_forward.1} parent=1 // pred_check
      _
    $region11: #{positional_encoding_forward.1} parent=1 // pred_check_branch
      %21 = sbr.rel (0) target = $region13
    $region12: #{positional_encoding_forward.1} parent=1 // pred_region
      %s23 = ssub.s32 256, 256
      %24 = vsyncadd [#allocation3], %s23
      %s25 = sshll.u32 [#allocation2], 4
      %s26 = int_to_ptr.vmem [resolvable:$true] %s25
      %31 = dma.vmem_to_hbm [thread:$0]  %s26, 256, %s2, [#allocation3], 128, 128, 8
    $region13: #{positional_encoding_forward.1} parent=1 // pred_fallthru
      _
    // Predicated region
    $region14: #{positional_encoding_forward.1} parent=1 // pred_check
      _
    $region15: #{positional_encoding_forward.1} parent=1 // pred_check_branch
      %33 = sbr.rel (0) target = $region17
    $region16: #{positional_encoding_forward.1} parent=1 // pred_region
      %34 = dma.done [#allocation3], 256
    $region17: #{positional_encoding_forward.1} parent=1 // pred_fallthru
      _
    %35 = vsyncpa [#allocation3], 1

</llo_original>
